<compile_context>
chip_gen: v7x
topology: tpu7x:2x2x1
jax: 0.10.0
libtpu: 0.0.40
codegen_flags: <defaults>
</compile_context>

<pallas_src>
import jax
import jax.numpy as jnp
from jax.experimental import pallas as pl
from jax.experimental.pallas import tpu as pltpu


def _bayes_linear_kernel(x_ref, wmu_ref, sigw_ref, epsw_ref,
                         bmu_ref, sigb_ref, epsb_ref, o_ref):
    """One grid step == one (sample-block, batch-tile); L = S_blk * output_dim.

    x_ref    : (TN, D)  f32   input tile (shared across sample blocks)
    wmu_ref  : (D,  L)  f32   weight mean, lane-tiled S_blk times (resident)
    sigw_ref : (D,  L)  f32   exp(weight_log_sigma), lane-tiled (hoisted exp)
    epsw_ref : (D,  L)  bf16  weight noise for this sample block (lane-folded)
    bmu_ref  : (1,  L)  f32   bias mean, lane-tiled
    sigb_ref : (1,  L)  f32   exp(bias_log_sigma), lane-tiled
    epsb_ref : (1,  L)  f32   bias noise for this sample block (lane-folded)
    o_ref    : (TN, L)  f32   lane-dense output slab
    """
    # Reparameterized weights for all S_blk folded samples (VPU only; exp() was
    # hoisted to the wrapper so no per-step EUP work).
    w_blk = wmu_ref[...] + epsw_ref[...].astype(jnp.float32) * sigw_ref[...]
    b_blk = bmu_ref[...] + epsb_ref[...] * sigb_ref[...]
    # Single MXU matmul covers the whole sample block: (TN, D) @ (D, S_blk*O).
    y = jnp.dot(x_ref[...], w_blk, preferred_element_type=jnp.float32)
    o_ref[...] = (y + b_blk).astype(o_ref.dtype)


def _pick_sample_block(S, O):
    # Smallest divisor of S whose folded lane width (s_blk*O) is a multiple of
    # 128 (unmasked stores, lane-dense MXU tiles); otherwise fold all samples
    # so the block equals the full folded extent (always legal, lane-densest).
    for s_blk in range(1, S + 1):
        if S % s_blk == 0 and (s_blk * O) % 128 == 0:
            return s_blk
    return S


def _pick_batch_tile(N):
    # Largest 128-multiple tile that divides N; otherwise the full batch
    # (block == full extent is always legal).
    for tn in (512, 256, 128):
        if N % tn == 0:
            return tn
    return N


def bayes_linear_forward(x, w_mu, w_log_sigma, b_mu, b_log_sigma, eps_w, eps_b):
    """BayesLinear forward with a Pallas TPU kernel.

    x            : (N, D)      (shared across samples, like torch broadcasting)
    w_mu, w_ls   : (D, O)
    b_mu, b_ls   : (1, O)
    eps_w        : (S, D, O)   weight noise (host-sampled, as in get_noise())
    eps_b        : (S, O)      bias noise
    returns      : (S, N, O)   float32
    """
    N, D = x.shape
    O = w_mu.shape[1]
    S = eps_w.shape[0]

    s_blk = _pick_sample_block(S, O)
    tn = _pick_batch_tile(N)
    L = s_blk * O

    x = x.astype(jnp.float32)

    # Hoisted, sample-invariant exp(): computed once, not once per grid step.
    sigma_w = jnp.exp(w_log_sigma).astype(jnp.float32)
    sigma_b = jnp.exp(b_log_sigma).astype(jnp.float32)

    # Lane-fold s_blk samples per grid step (wrapper-side layout plumbing):
    # columns [s*O:(s+1)*O] of every folded array belong to sample s.
    w_mu_t    = jnp.tile(w_mu.astype(jnp.float32), (1, s_blk))   # (D, L)
    sigma_w_t = jnp.tile(sigma_w, (1, s_blk))                    # (D, L)
    b_mu_t    = jnp.tile(b_mu.astype(jnp.float32), (1, s_blk))   # (1, L)
    sigma_b_t = jnp.tile(sigma_b, (1, s_blk))                    # (1, L)

    # Noise: lane-packed; weight noise compressed to bf16 to halve the dominant
    # HBM stream (kernel is bandwidth-bound on eps_w). Bias noise stays f32
    # (it is tiny: S*O elements).
    eps_w_p = (jnp.transpose(eps_w, (1, 0, 2))
               .reshape(D, S * O).astype(jnp.bfloat16))          # (D, S*O)
    eps_b_p = eps_b.astype(jnp.float32).reshape(1, S * O)        # (1, S*O)

    # Sample-block axis outer, batch-tile axis inner: eps_w block stays
    # resident across the inner batch loop (only x tiles are re-fetched).
    grid = (S // s_blk, N // tn)

    # Note: the constant-index params (w_mu_t, sigma_w_t, b_mu_t, sigma_b_t)
    # could additionally be single-buffered (pipeline_mode=pl.Buffered(1)) to
    # shave VMEM on v7x's 64 MiB; not needed at these sizes.
    grid_spec = pltpu.PrefetchScalarGridSpec(
        num_scalar_prefetch=0,
        grid=grid,
        in_specs=[
            pl.BlockSpec((tn, D), lambda sb, ni: (ni, 0)),   # x (per batch tile)
            pl.BlockSpec((D, L), lambda sb, ni: (0, 0)),     # w_mu   (resident)
            pl.BlockSpec((D, L), lambda sb, ni: (0, 0)),     # sigma_w (resident)
            pl.BlockSpec((D, L), lambda sb, ni: (0, sb)),    # eps_w (per sample block)
            pl.BlockSpec((1, L), lambda sb, ni: (0, 0)),     # b_mu   (resident)
            pl.BlockSpec((1, L), lambda sb, ni: (0, 0)),     # sigma_b (resident)
            pl.BlockSpec((1, L), lambda sb, ni: (0, sb)),    # eps_b (per sample block)
        ],
        out_specs=pl.BlockSpec((tn, L), lambda sb, ni: (ni, sb)),
    )

    out_folded = pl.pallas_call(
        _bayes_linear_kernel,
        out_shape=jax.ShapeDtypeStruct((N, S * O), jnp.float32),
        grid_spec=grid_spec,
        compiler_params=pltpu.CompilerParams(
            # Both axes independent -> megacore / v7x's 2 TensorCores can shard.
            dimension_semantics=("parallel", "parallel")),
    )(x, w_mu_t, sigma_w_t, eps_w_p, b_mu_t, sigma_b_t, eps_b_p)

    # (N, S*O) -> (N, S, O) -> (S, N, O)
    return jnp.transpose(out_folded.reshape(N, S, O), (1, 0, 2))


if __name__ == "__main__":
    # Small shapes consistent with the module's constructor.
    num_samples = 4     # S
    input_dim = 32      # D
    output_dim = 16     # O
    batch = 8           # N

    key = jax.random.PRNGKey(0)
    k = jax.random.split(key, 7)
    w_mu = 0.1 * jax.random.normal(k[0], (input_dim, output_dim), jnp.float32)
    w_log_sigma = -2.0 + 0.05 * jax.random.normal(
        k[1], (input_dim, output_dim), jnp.float32)
    b_mu = 0.1 * jax.random.normal(k[2], (1, output_dim), jnp.float32)
    b_log_sigma = -2.0 + 0.05 * jax.random.normal(
        k[3], (1, output_dim), jnp.float32)
    # Host-sampled noise (stands in for GaussianSampler; fix_random_noise=True
    # corresponds to reusing the same eps tensors on every call).
    eps_w = jax.random.normal(
        k[4], (num_samples, input_dim, output_dim), jnp.float32)
    eps_b = jax.random.normal(k[5], (num_samples, output_dim), jnp.float32)
    x = jax.random.normal(k[6], (batch, input_dim), jnp.float32)

    out = bayes_linear_forward(x, w_mu, w_log_sigma, b_mu, b_log_sigma,
                               eps_w, eps_b)
    out = jax.block_until_ready(out)

    # Pure-JAX reference, using the same bf16-quantized weight noise the kernel
    # consumes (the bf16 compression is the only intentional numeric change).
    eps_w_q = eps_w.astype(jnp.bfloat16).astype(jnp.float32)
    w_s = w_mu[None] + eps_w_q * jnp.exp(w_log_sigma)[None]            # (S,D,O)
    b_s = b_mu[None] + eps_b[:, None, :] * jnp.exp(b_log_sigma)[None]  # (S,1,O)
    ref = jnp.einsum("nd,sdo->sno", x, w_s) + b_s                      # (S,N,O)

    assert out.shape == (num_samples, batch, output_dim)
    assert jnp.allclose(out, ref, atol=1e-4, rtol=1e-4), \
        float(jnp.max(jnp.abs(out - ref)))

    print("KERNEL_OK")
</pallas_src>

<mosaic_0001>
module attributes {stable_mosaic.version = 11 : i64} {
  func.func @_bayes_linear_kernel(%arg0: i32, %arg1: i32, %arg2: memref<8x32xf32, #tpu.memory_space<vmem>>, %arg3: memref<32x64xf32, #tpu.memory_space<vmem>>, %arg4: memref<32x64xf32, #tpu.memory_space<vmem>>, %arg5: memref<32x64xbf16, #tpu.memory_space<vmem>>, %arg6: memref<1x64xf32, #tpu.memory_space<vmem>>, %arg7: memref<1x64xf32, #tpu.memory_space<vmem>>, %arg8: memref<1x64xf32, #tpu.memory_space<vmem>>, %arg9: memref<8x64xf32, #tpu.memory_space<vmem>>) attributes {dimension_semantics = [#tpu.dimension_semantics<parallel>, #tpu.dimension_semantics<parallel>], iteration_bounds = array<i64: 1, 1>, scalar_prefetch = 0 : i64, scratch_operands = 0 : i64, tpu.core_type = #tpu.core_type<tc>, window_params = [{transform_indices = @transform_0, window_bounds = array<i64: 8, 32>}, {pipeline_mode = #tpu.pipeline_mode<synchronous>, transform_indices = @transform_1, window_bounds = array<i64: 32, 64>}, {pipeline_mode = #tpu.pipeline_mode<synchronous>, transform_indices = @transform_2, window_bounds = array<i64: 32, 64>}, {transform_indices = @transform_3, window_bounds = array<i64: 32, 64>}, {pipeline_mode = #tpu.pipeline_mode<synchronous>, transform_indices = @transform_4, window_bounds = array<i64: 1, 64>}, {pipeline_mode = #tpu.pipeline_mode<synchronous>, transform_indices = @transform_5, window_bounds = array<i64: 1, 64>}, {transform_indices = @transform_6, window_bounds = array<i64: 1, 64>}, {transform_indices = @transform_7, window_bounds = array<i64: 8, 64>}]} {
    %c0 = arith.constant 0 : index
    %c0_0 = arith.constant 0 : index
    %0 = vector.load %arg3[%c0, %c0_0] : memref<32x64xf32, #tpu.memory_space<vmem>>, vector<32x64xf32>
    %c0_1 = arith.constant 0 : index
    %c0_2 = arith.constant 0 : index
    %1 = vector.load %arg5[%c0_1, %c0_2] : memref<32x64xbf16, #tpu.memory_space<vmem>>, vector<32x64xbf16>
    %2 = arith.extf %1 : vector<32x64xbf16> to vector<32x64xf32>
    %c0_3 = arith.constant 0 : index
    %c0_4 = arith.constant 0 : index
    %3 = vector.load %arg4[%c0_3, %c0_4] : memref<32x64xf32, #tpu.memory_space<vmem>>, vector<32x64xf32>
    %4 = arith.mulf %2, %3 : vector<32x64xf32>
    %5 = arith.addf %0, %4 : vector<32x64xf32>
    %c0_5 = arith.constant 0 : index
    %c0_6 = arith.constant 0 : index
    %6 = vector.load %arg6[%c0_5, %c0_6] : memref<1x64xf32, #tpu.memory_space<vmem>>, vector<1x64xf32>
    %c0_7 = arith.constant 0 : index
    %c0_8 = arith.constant 0 : index
    %7 = vector.load %arg8[%c0_7, %c0_8] : memref<1x64xf32, #tpu.memory_space<vmem>>, vector<1x64xf32>
    %c0_9 = arith.constant 0 : index
    %c0_10 = arith.constant 0 : index
    %8 = vector.load %arg7[%c0_9, %c0_10] : memref<1x64xf32, #tpu.memory_space<vmem>>, vector<1x64xf32>
    %9 = arith.mulf %7, %8 : vector<1x64xf32>
    %10 = arith.addf %6, %9 : vector<1x64xf32>
    %c0_11 = arith.constant 0 : index
    %c0_12 = arith.constant 0 : index
    %11 = vector.load %arg2[%c0_11, %c0_12] : memref<8x32xf32, #tpu.memory_space<vmem>>, vector<8x32xf32>
    %cst = arith.constant dense<0.000000e+00> : vector<8x64xf32>
    %12 = tpu.matmul %11, %5, %cst {dimension_numbers = #tpu.dot_dimension_numbers<[1], [0], [0], [1], [0, 0, 1, 1], [], []>} : vector<8x32xf32>, vector<32x64xf32>, vector<8x64xf32> -> vector<8x64xf32>
    %13 = vector.broadcast %10 : vector<1x64xf32> to vector<8x64xf32>
    %14 = arith.addf %12, %13 : vector<8x64xf32>
    %c0_13 = arith.constant 0 : index
    %c0_14 = arith.constant 0 : index
    %15 = vector.load %arg9[%c0_13, %c0_14] : memref<8x64xf32, #tpu.memory_space<vmem>>, vector<8x64xf32>
    tpu.vector_store %arg9[%c0_13, %c0_14], %14 {strides = array<i32>} : memref<8x64xf32, #tpu.memory_space<vmem>>, vector<8x64xf32>,
    return
  }
  func.func @transform_0(%arg0: i32, %arg1: i32) -> (i32, i32) {
    %c0_i32 = arith.constant 0 : i32
    %c0_i32_0 = arith.constant 0 : i32
    return %arg1, %c0_i32 : i32, i32
  }
  func.func @transform_1(%arg0: i32, %arg1: i32) -> (i32, i32) {
    %c0_i32 = arith.constant 0 : i32
    %c0_i32_0 = arith.constant 0 : i32
    %c0_i32_1 = arith.constant 0 : i32
    return %c0_i32, %c0_i32_0 : i32, i32
  }
  func.func @transform_2(%arg0: i32, %arg1: i32) -> (i32, i32) {
    %c0_i32 = arith.constant 0 : i32
    %c0_i32_0 = arith.constant 0 : i32
    %c0_i32_1 = arith.constant 0 : i32
    return %c0_i32, %c0_i32_0 : i32, i32
  }
  func.func @transform_3(%arg0: i32, %arg1: i32) -> (i32, i32) {
    %c0_i32 = arith.constant 0 : i32
    %c0_i32_0 = arith.constant 0 : i32
    return %c0_i32, %arg0 : i32, i32
  }
  func.func @transform_4(%arg0: i32, %arg1: i32) -> (i32, i32) {
    %c0_i32 = arith.constant 0 : i32
    %c0_i32_0 = arith.constant 0 : i32
    %c0_i32_1 = arith.constant 0 : i32
    return %c0_i32, %c0_i32_0 : i32, i32
  }
  func.func @transform_5(%arg0: i32, %arg1: i32) -> (i32, i32) {
    %c0_i32 = arith.constant 0 : i32
    %c0_i32_0 = arith.constant 0 : i32
    %c0_i32_1 = arith.constant 0 : i32
    return %c0_i32, %c0_i32_0 : i32, i32
  }
  func.func @transform_6(%arg0: i32, %arg1: i32) -> (i32, i32) {
    %c0_i32 = arith.constant 0 : i32
    %c0_i32_0 = arith.constant 0 : i32
    return %c0_i32, %arg0 : i32, i32
  }
  func.func @transform_7(%arg0: i32, %arg1: i32) -> (i32, i32) {
    %c0_i32 = arith.constant 0 : i32
    return %arg1, %arg0 : i32, i32
  }
}

</mosaic_0001>

<llo_original>
// kernel: tpu_custom_call.1
$region0: #{tpu_custom_call.1}
  #allocation0 [shape = 'u32[]', space=smem, size = 0x4, offset = 0x4, fixed_abs, tag = 'smem constant byte address 0x4 - core index']
  #allocation1 [shape = 'u32[144,128]{1,0:T(1,128)}', space=vmem, size = 0x12000, scoped, tag = 'internal scratch']
  %s0 = inlined_call_operand.hbm [shape: f32[8,32], index: 0, kind: input, shape index: {}]
  %s1 = inlined_call_operand.hbm [shape: f32[32,64], index: 1, kind: input, shape index: {}]
  %s2 = inlined_call_operand.hbm [shape: f32[32,64], index: 2, kind: input, shape index: {}]
  %s3 = inlined_call_operand.hbm [shape: bf16[32,64], index: 3, kind: input, shape index: {}]
  %s4 = inlined_call_operand.vmem [shape: f32[1,64], index: 4, kind: input, shape index: {}]
  %s5 = inlined_call_operand.vmem [shape: f32[1,64], index: 5, kind: input, shape index: {}]
  %s6 = inlined_call_operand.vmem [shape: f32[1,64], index: 6, kind: input, shape index: {}]
  %s7 = inlined_call_operand.hbm [shape: f32[8,64], index: 7, kind: output, shape index: {}]
  %s8 = sld [smem:[#allocation0]]
  $region54: #{tpu_custom_call.1} parent=0
    _
  %s10 = ssub.s32 1, %s8
  %s11 = scalar_select 0, %s10, %s8
  $region1: #{tpu_custom_call.1} parent=0
    #allocation2 [shape = 'u8[4096]{0}', space=vmem, size = 0x1000, scoped, tag = 'input window, operand 0, single buffered']
    #allocation3 [shape = 's32[1]{0}', space=sflag, size = 0x4, scoped, tag = 'scoped memory for tpu_custom_call.1']
    #allocation4 [shape = 's32[1]{0}', space=sflag, size = 0x4, scoped, tag = 'scoped memory for tpu_custom_call.1']
    #allocation5 [shape = 'u8[16384]{0}', space=vmem, size = 0x4000, scoped, tag = 'input window, operand 1, single buffered']
    #allocation6 [shape = 's32[1]{0}', space=sflag, size = 0x4, scoped, tag = 'scoped memory for tpu_custom_call.1']
    #allocation7 [shape = 'u8[16384]{0}', space=vmem, size = 0x4000, scoped, tag = 'input window, operand 2, single buffered']
    #allocation8 [shape = 'u8[8192]{0}', space=vmem, size = 0x2000, scoped, tag = 'input window, operand 3, single buffered']
    #allocation9 [shape = 's32[1]{0}', space=sflag, size = 0x4, scoped, tag = 'scoped memory for tpu_custom_call.1']
    #allocation10 [shape = 'u8[4096]{0}', space=vmem, size = 0x1000, scoped, tag = 'output window, operand 0, single buffered']
    %12 = vsyncpa [#allocation3], 0
    %13 = vsyncpa [#allocation6], 0
    %14 = vsyncpa [#allocation9], 0
    %15 = vsyncpa [#allocation4], 0
    // Predicated region
    $region2: #{tpu_custom_call.1} parent=1 // pred_check
      _
    $region3: #{tpu_custom_call.1} parent=1 // pred_check_branch
      %17 = sbr.rel (0) target = $region5
    $region4: #{tpu_custom_call.1} parent=1 // pred_region
      %s19 = ssub.s32 128, 128
      %20 = vsyncadd [#allocation3], %s19
      %s22 = sshll.u32 [#allocation2], 4
      %s23 = int_to_ptr.vmem [resolvable:$true] %s22
      %25 = dma.hbm_to_vmem [thread:$0]  %s0, 128, %s23, [#allocation3]
    $region5: #{tpu_custom_call.1} parent=1 // pred_fallthru
      _
    // Predicated region
    $region6: #{tpu_custom_call.1} parent=1 // pred_check
      _
    $region7: #{tpu_custom_call.1} parent=1 // pred_check_branch
      %27 = sbr.rel (0) target = $region9
    $region8: #{tpu_custom_call.1} parent=1 // pred_region
      %s29 = ssub.s32 512, 512
      %30 = vsyncadd [#allocation6], %s29
      %s31 = sshll.u32 [#allocation5], 4
      %s32 = int_to_ptr.vmem [resolvable:$true] %s31
      %37 = dma.hbm_to_vmem [thread:$0]  %s1, 512, %s32, [#allocation6], 128, 128, 8
    $region9: #{tpu_custom_call.1} parent=1 // pred_fallthru
      _
    // Predicated region
    $region10: #{tpu_custom_call.1} parent=1 // pred_check
      _
    $region11: #{tpu_custom_call.1} parent=1 // pred_check_branch
      %39 = sbr.rel (0) target = $region13
    $region12: #{tpu_custom_call.1} parent=1 // pred_region
      %s41 = ssub.s32 512, 512
      %42 = vsyncadd [#allocation6], %s41
      %s43 = sshll.u32 [#allocation7], 4
      %s44 = int_to_ptr.vmem [resolvable:$true] %s43
      %49 = dma.hbm_to_vmem [thread:$0]  %s2, 512, %s44, [#allocation6], 128, 128, 8
    $region13: #{tpu_custom_call.1} parent=1 // pred_fallthru
      _
    // Predicated region
    $region14: #{tpu_custom_call.1} parent=1 // pred_check
      _
    $region15: #{tpu_custom_call.1} parent=1 // pred_check_branch
      %51 = sbr.rel (0) target = $region17
    $region16: #{tpu_custom_call.1} parent=1 // pred_region
      %s53 = ssub.s32 256, 256
      %54 = vsyncadd [#allocation9], %s53
      %s55 = sshll.u32 [#allocation8], 4
      %s56 = int_to_ptr.vmem [resolvable:$true] %s55
      %61 = dma.hbm_to_vmem [thread:$0]  %s3, 256, %s56, [#allocation9], 64, 64, 4
    $region17: #{tpu_custom_call.1} parent=1 // pred_fallthru
      _
    // Predicated region
    $region18: #{tpu_custom_call.1} parent=1 // pred_check
      _
    $region19: #{tpu_custom_call.1} parent=1 // pred_check_branch
      %63 = sbr.rel (0) target = $region21
    $region20: #{tpu_custom_call.1} parent=1 // pred_region
      _
    $region21: #{tpu_custom_call.1} parent=1 // pred_fallthru
      _
    // Predicated region
    $region22: #{tpu_custom_call.1} parent=1 // pred_check
      _
    $region23: #{tpu_custom_call.1} parent=1 // pred_check_branch
      %65 = sbr.rel (0) target = $region25
    $region24: #{tpu_custom_call.1} parent=1 // pred_region
      _
    $region25: #{tpu_custom_call.1} parent=1 // pred_fallthru
      _
    // Predicated region
    $region26: #{tpu_custom_call.1} parent=1 // pred_check
      _
    $region27: #{tpu_custom_call.1} parent=1 // pred_check_branch
      %67 = sbr.rel (0) target = $region29
    $region28: #{tpu_custom_call.1} parent=1 // pred_region
      _
    $region29: #{tpu_custom_call.1} parent=1 // pred_fallthru
      _
    // Predicated region
    $region30: #{tpu_custom_call.1} parent=1 // pred_check
      _
    $region31: #{tpu_custom_call.1} parent=1 // pred_check_branch
      %69 = sbr.rel (0) target = $region33
    $region32: #{tpu_custom_call.1} parent=1 // pred_region
      %70 = dma.done [#allocation3], 128
    $region33: #{tpu_custom_call.1} parent=1 // pred_fallthru
      _
    // Predicated region
    $region34: #{tpu_custom_call.1} parent=1 // pred_check
      _
    $region35: #{tpu_custom_call.1} parent=1 // pred_check_branch
      %72 = sbr.rel (0) target = $region37
    $region36: #{tpu_custom_call.1} parent=1 // pred_region
      %73 = dma.done [#allocation6], 512
    $region37: #{tpu_custom_call.1} parent=1 // pred_fallthru
      _
    // Predicated region
    $region38: #{tpu_custom_call.1} parent=1 // pred_check
      _
    $region39: #{tpu_custom_call.1} parent=1 // pred_check_branch
      %75 = sbr.rel (0) target = $region41
    $region40: #{tpu_custom_call.1} parent=1 // pred_region
      %76 = dma.done [#allocation6], 512
    $region41: #{tpu_custom_call.1} parent=1 // pred_fallthru
      _
    // Predicated region
    $region42: #{tpu_custom_call.1} parent=1 // pred_check
      _
    $region43: #{tpu_custom_call.1} parent=1 // pred_check_branch
      %78 = sbr.rel (0) target = $region45
    $region44: #{tpu_custom_call.1} parent=1 // pred_region
      %79 = dma.done [#allocation9], 256
    $region45: #{tpu_custom_call.1} parent=1 // pred_fallthru
      _
    %v80 = vld [vmem:[#allocation5] sm:$0xff]
    %v81 = vld [vmem:[#allocation5 + $0x8] sm:$0xff]
    %v82 = vld [vmem:[#allocation5 + $0x10] sm:$0xff]
    %v83 = vld [vmem:[#allocation5 + $0x18] sm:$0xff]
    %v84 = vld [vmem:[#allocation8] sm:$0xf]
    %v85 = vld [vmem:[#allocation8 + $0x4] sm:$0xf]
    %v86 = vld [vmem:[#allocation8 + $0x8] sm:$0xf]
    %v87 = vld [vmem:[#allocation8 + $0xc] sm:$0xf]
    %v88 = vunpack.c.l.bf16 %v84
    %v89 = vunpack.c.l.bf16 %v85
    %v90 = vunpack.c.l.bf16 %v86
    %v91 = vunpack.c.l.bf16 %v87
    %v92 = vld [vmem:[#allocation7] sm:$0xff]
    %v93 = vld [vmem:[#allocation7 + $0x8] sm:$0xff]
    %v94 = vld [vmem:[#allocation7 + $0x10] sm:$0xff]
    %v95 = vld [vmem:[#allocation7 + $0x18] sm:$0xff]
    %v96 = vmul.f32 %v88, %v92
    %v97 = vmul.f32 %v89, %v93
    %v98 = vmul.f32 %v90, %v94
    %v99 = vmul.f32 %v91, %v95
    %v100 = vadd.f32 %v80, %v96
    %v101 = vadd.f32 %v81, %v97
    %v102 = vadd.f32 %v82, %v98
    %v103 = vadd.f32 %v83, %v99
    %v104 = vld [vmem:[%s4] sm:$0x1]
    %v105 = vld [vmem:[%s6] sm:$0x1]
    %v106 = vld [vmem:[%s5] sm:$0x1]
    %v107 = vmul.f32 %v105, %v106
    %v108 = vadd.f32 %v104, %v107
    %v109 = vld [vmem:[#allocation2] sm:$0xff]
    %v111 = vlaneseq
    %v112 = vshrl.u32 %v111, 7
    %v113 = vsub.s32 0, %v112
    %v114 = vrot.slane %v108, %v113
    %vm116 = vcmask 261120
    %v118 = vsel %vm116, %v109, 0
    %120 = vmatprep.subr.mxu0 0.0
    %121 = vmatpush1.msra.mxu0 %v100
    %122 = vmatprep.subr.mxu0 0.0
    %123 = vmatpush1.msra.mxu0 %v101
    %124 = vmatprep.subr.mxu0 0.0
    %125 = vmatpush1.msra.mxu0 %v102
    %126 = vmatprep.subr.mxu0 0.0
    %127 = vmatpush1.msra.mxu0 %v103
    %128 = vmatprep.subr.mxu0 0.0
    %129 = vmatpush1.msra.mxu0 0.0
    %130 = vmatprep.subr.mxu0 0.0
    %131 = vmatpush1.msra.mxu0 0.0
    %132 = vmatprep.subr.mxu0 0.0
    %133 = vmatpush1.msra.mxu0 0.0
    %134 = vmatprep.subr.mxu0 0.0
    %135 = vmatpush1.msra.mxu0 0.0
    %136 = vmatprep.subr.mxu0 0.0
    %137 = vmatpush1.msra.mxu0 0.0
    %138 = vmatprep.subr.mxu0 0.0
    %139 = vmatpush1.msra.mxu0 0.0
    %140 = vmatprep.subr.mxu0 0.0
    %141 = vmatpush1.msra.mxu0 0.0
    %142 = vmatprep.subr.mxu0 0.0
    %143 = vmatpush1.msra.mxu0 0.0
    %144 = vmatprep.subr.mxu0 0.0
    %145 = vmatpush1.msra.mxu0 0.0
    %146 = vmatprep.subr.mxu0 0.0
    %147 = vmatpush1.msra.mxu0 0.0
    %148 = vmatprep.subr.mxu0 0.0
    %149 = vmatpush1.msra.mxu0 0.0
    %150 = vmatprep.subr.mxu0 0.0
    %151 = vmatpush1.msra.mxu0 0.0
    %152 = vmatprep.subr.mxu0 0.0
    %153 = vmatpush1.msra.mxu0 0.0
    %154 = vmatprep.subr.mxu0 0.0
    %155 = vmatpush1.msra.mxu0 0.0
    %156 = vmatprep.subr.mxu0 0.0
    %157 = vmatpush1.msra.mxu0 0.0
    %158 = vmatprep.subr.mxu0 0.0
    %159 = vmatpush1.msra.mxu0 0.0
    %160 = vmatprep.subr.mxu0 0.0
    %161 = vmatpush1.msra.mxu0 0.0
    %162 = vmatprep.subr.mxu0 0.0
    %163 = vmatpush1.msra.mxu0 0.0
    %164 = vmatprep.subr.mxu0 0.0
    %165 = vmatpush1.msra.mxu0 0.0
    %166 = vmatprep.subr.mxu0 0.0
    %167 = vmatpush1.msra.mxu0 0.0
    %168 = vmatprep.subr.mxu0 0.0
    %169 = vmatpush1.msra.mxu0 0.0
    %170 = vmatprep.subr.mxu0 0.0
    %171 = vmatpush1.msra.mxu0 0.0
    %172 = vmatprep.subr.mxu0 0.0
    %173 = vmatpush1.msra.mxu0 0.0
    %174 = vmatprep.subr.mxu0 0.0
    %175 = vmatpush1.msra.mxu0 0.0
    %176 = vmatprep.subr.mxu0 0.0
    %177 = vmatpush1.msra.mxu0 0.0
    %178 = vmatprep.subr.mxu0 0.0
    %179 = vmatpush1.msra.mxu0 0.0
    %180 = vmatprep.subr.mxu0 0.0
    %181 = vmatpush1.msra.mxu0 0.0
    %182 = vmatprep.subr.mxu0 0.0
    %183 = vmatpush1.msra.mxu0 0.0
    %184 = vmatprep.mubr.f32.mxu0 0.0
    %185 = vmatmul.mubr.f32.gmra.mrb[0].mxu0 %v118
    %v186 = vpop.f32.mrb[0].mxu0
    %v187 = vadd.f32 %v114, %v186
    %v188 = vpop.f32.mrb[0].mxu0
    %189 = vdwg.mxu0
    %vm190 = vcmask 523264
    %191 = vst.msk [vmem:[#allocation10] sm:$0xff] %vm190, %v187
    // Predicated region
    $region46: #{tpu_custom_call.1} parent=1 // pred_check
      _
    $region47: #{tpu_custom_call.1} parent=1 // pred_check_branch
      %193 = sbr.rel (0) target = $region49
    $region48: #{tpu_custom_call.1} parent=1 // pred_region
      %s195 = ssub.s32 128, 128
      %196 = vsyncadd [#allocation4], %s195
      %s198 = sshll.u32 [#allocation10], 4
      %s199 = int_to_ptr.vmem [resolvable:$true] %s198
      %201 = dma.vmem_to_hbm [thread:$0]  %s199, 128, %s7, [#allocation4]
    $region49: #{tpu_custom_call.1} parent=1 // pred_fallthru
      _
    // Predicated region
    $region50: #{tpu_custom_call.1} parent=1 // pred_check
      _
    $region51: #{tpu_custom_call.1} parent=1 // pred_check_branch
      %203 = sbr.rel (0) target = $region53
    $region52: #{tpu_custom_call.1} parent=1 // pred_region
      %204 = dma.done [#allocation4], 128
    $region53: #{tpu_custom_call.1} parent=1 // pred_fallthru
      _
    %205 = vsyncpa [#allocation3], 1
    %206 = vsyncpa [#allocation6], 1
    %207 = vsyncpa [#allocation9], 1
    %208 = vsyncpa [#allocation4], 1

</llo_original>
